<compile_context>
chip_gen: v7x
topology: tpu7x:2x2x1
jax: 0.10.0
libtpu: 0.0.40
codegen_flags: <defaults>
</compile_context>

<pallas_src>
import functools

import jax
import jax.numpy as jnp
from jax import lax
from jax.experimental import pallas as pl
from jax.experimental.pallas import tpu as pltpu

_LANES = 128
_ACC_ROWS = 32      # per-core accumulator height: 4 independent (8,128) vreg chains
_CHUNK = 512        # rows consumed per inner loop step (bounds live values in-kernel)


def _masked_l1_kernel(x_ref, y_ref, num_ref, den_ref, *,
                      tile_rows, steps_per_core, total_rows, mask_from_block):
    """One grid step processes a (tile_rows, 128) slab of x and y.

    x_ref, y_ref : (TR, 128)        predictions / labels (flattened, lane-dense, native dtype)
    num_ref      : (_ACC_ROWS, 128) per-core partial sum of |x-y| over y>0   (f32)
    den_ref      : (_ACC_ROWS, 128) per-core partial count of y>0            (f32)
    """
    c = pl.program_id(0)          # megacore split (parallel axis)
    i = pl.program_id(1)          # sequential steps within this core's range

    @pl.when(i == 0)
    def _():
        num_ref[...] = jnp.zeros_like(num_ref)
        den_ref[...] = jnp.zeros_like(den_ref)

    blk = c * steps_per_core + i            # logical block index (pre-clamp)
    nchunks = tile_rows // _CHUNK
    g = _CHUNK // _ACC_ROWS

    def accum_chunk(s, masked):
        r0 = pl.multiple_of(s * _CHUNK, _CHUNK)
        x = x_ref[pl.ds(r0, _CHUNK), :].astype(jnp.float32)
        y = y_ref[pl.ds(r0, _CHUNK), :].astype(jnp.float32)
        sel = y > 0.0
        if masked:
            # Last (partial) block and clamped duplicate blocks: drop rows past the
            # real array.  Garbage values never reach the sums (select, not multiply).
            rid = (blk * tile_rows + r0
                   + lax.broadcasted_iota(jnp.int32, (_CHUNK, 1), 0))
            sel = jnp.logical_and(sel, rid < total_rows)
        diff = jnp.where(sel, jnp.abs(x - y), 0.0)
        cnt = sel.astype(jnp.float32)
        # (CHUNK,128) -> (_ACC_ROWS,128): pure VPU vreg adds, 4 independent chains.
        num_ref[...] += diff.reshape(g, _ACC_ROWS, _LANES).sum(axis=0)
        den_ref[...] += cnt.reshape(g, _ACC_ROWS, _LANES).sum(axis=0)

    if mask_from_block is None:
        @pl.loop(0, nchunks)
        def _(s):
            accum_chunk(s, masked=False)
    else:
        @pl.when(blk < mask_from_block)
        def _():
            @pl.loop(0, nchunks)
            def _(s):
                accum_chunk(s, masked=False)

        @pl.when(blk >= mask_from_block)
        def _():
            @pl.loop(0, nchunks)
            def _(s):
                accum_chunk(s, masked=True)


def _to_kernel_dtype(a):
    """Keep bf16/f32 native (halves HBM traffic for bf16); cast everything else to f32."""
    a = jnp.asarray(a)
    if a.dtype == jnp.float32 or a.dtype == jnp.bfloat16:
        return a
    return a.astype(jnp.float32)


def skeleton_based_loss1(x_output, y_labels, *, max_tile_rows=None, core_split=None):
    """Masked mean absolute error: mean(|x_output[y>0] - y_labels[y>0]|)."""
    kind = ""
    try:
        kind = jax.devices()[0].device_kind.lower()
    except Exception:
        pass
    if max_tile_rows is None:
        # 8 MiB/stream/step on v6e/v7x (fits v7x's 64 MiB VMEM with double buffering),
        # 4 MiB on v5e (lower HBM BW -> per-step overhead already small).
        max_tile_rows = 8192 if "v5" in kind else 16384
    if core_split is None:
        core_split = 2 if "v7" in kind else 1        # dual-TC only on v7x
    max_tile_rows = max(_CHUNK, (int(max_tile_rows) // _CHUNK) * _CHUNK)
    ncs = max(1, int(core_split))

    x = _to_kernel_dtype(x_output).reshape(-1)
    y = _to_kernel_dtype(y_labels).reshape(-1)
    assert x.shape == y.shape, "x_output and y_labels must have the same number of elements"
    p = x.shape[0]

    rows0 = pl.cdiv(p, _LANES)
    # Tile rows per grid step: per-core share rounded up to a _CHUNK multiple.
    tr = min(max_tile_rows, pl.cdiv(rows0, ncs * _CHUNK) * _CHUNK)
    rows = max(rows0, tr)                     # only tiny inputs get padded up to one tile
    padded = rows * _LANES
    if padded != p:
        # Rare path (numel not a multiple of 128, or tiny tensor).  Zero-padded labels
        # never satisfy y > 0, so padding is excluded from the loss automatically.
        x = jnp.pad(x, (0, padded - p))
        y = jnp.pad(y, (0, padded - p))
    x2 = x.reshape(rows, _LANES)
    y2 = y.reshape(rows, _LANES)

    nblocks = pl.cdiv(rows, tr)               # real data blocks (last may be partial)
    steps = pl.cdiv(nblocks, ncs)             # sequential steps per core
    has_partial = nblocks * tr != rows        # last block overhangs -> mask its tail rows
    has_dups = ncs * steps != nblocks         # grid padding blocks -> clamp + fully mask
    if has_partial:
        mask_from = nblocks - 1
    elif has_dups:
        mask_from = nblocks
    else:
        mask_from = None

    if has_dups:
        # Clamp so no block ever starts at/after `rows` (no fully-OOB DMA); the
        # duplicated data is discarded by the in-kernel row mask.
        def in_index(c, i, _s=steps, _nb=nblocks):
            return (jnp.minimum(c * _s + i, _nb - 1), 0)
    else:
        def in_index(c, i, _s=steps):
            return (c * _s + i, 0)

    kernel = functools.partial(
        _masked_l1_kernel,
        tile_rows=tr, steps_per_core=steps, total_rows=rows,
        mask_from_block=mask_from)

    in_bytes = x2.size * x2.dtype.itemsize + y2.size * y2.dtype.itemsize
    out_bytes = 2 * ncs * _ACC_ROWS * _LANES * 4
    # Double-buffered inputs + generous margin for in-kernel temporaries.
    vmem_limit = int(min(2 * tr * _LANES * (x2.dtype.itemsize + y2.dtype.itemsize)
                         + (16 << 20), 100 << 20))

    num, den = pl.pallas_call(
        kernel,
        out_shape=(jax.ShapeDtypeStruct((ncs * _ACC_ROWS, _LANES), jnp.float32),
                   jax.ShapeDtypeStruct((ncs * _ACC_ROWS, _LANES), jnp.float32)),
        grid_spec=pltpu.PrefetchScalarGridSpec(
            num_scalar_prefetch=0,
            grid=(ncs, steps),
            in_specs=[
                pl.BlockSpec((tr, _LANES), in_index),
                pl.BlockSpec((tr, _LANES), in_index),
            ],
            out_specs=(pl.BlockSpec((_ACC_ROWS, _LANES), lambda c, i: (c, 0)),
                       pl.BlockSpec((_ACC_ROWS, _LANES), lambda c, i: (c, 0))),
        ),
        compiler_params=pltpu.CompilerParams(
            dimension_semantics=("parallel", "arbitrary"),
            vmem_limit_bytes=vmem_limit),
        cost_estimate=pl.CostEstimate(
            flops=int(6 * rows * _LANES),
            transcendentals=0,
            bytes_accessed=int(in_bytes + out_bytes)),
    )(x2, y2)

    # Tiny final collapse (2 * ncs*32*128 elements) + divide in plain JAX.
    return jnp.sum(num) / jnp.sum(den)


def _reference(x_output, y_labels):
    """Pure-JAX reference of the PyTorch module's forward pass."""
    xf = jnp.asarray(x_output, jnp.float32)
    yf = jnp.asarray(y_labels, jnp.float32)
    m = yf > 0
    diff = jnp.where(m, jnp.abs(xf - yf), 0.0)
    return jnp.sum(diff) / jnp.sum(m)


if __name__ == "__main__":
    key = jax.random.PRNGKey(0)
    k1, k2, k3, k4 = jax.random.split(key, 4)

    # --- Test 1: module-like shapes (N, C, H, W), default tiling -------------------
    N, C, H, W = 2, 4, 16, 16
    x_output = jax.random.normal(k1, (N, C, H, W), dtype=jnp.float32)
    y_raw = jax.random.normal(k2, (N, C, H, W), dtype=jnp.float32)
    # sparse "skeleton" label map: positive target where raw > 0.3, else 0 (don't care)
    y_labels = jnp.where(y_raw > 0.3, y_raw, 0.0)

    loss = jax.block_until_ready(skeleton_based_loss1(x_output, y_labels))
    ref = jax.block_until_ready(_reference(x_output, y_labels))
    assert jnp.allclose(loss, ref, rtol=1e-4, atol=1e-6), (loss, ref)

    # --- Test 2: exercise the partial-block / clamped-duplicate masked paths -------
    x2_t = jax.random.normal(k3, (1030, 128), dtype=jnp.float32)
    y2_raw = jax.random.normal(k4, (1030, 128), dtype=jnp.float32)
    y2_t = jnp.where(y2_raw > 0.3, y2_raw, 0.0)

    loss2 = jax.block_until_ready(
        skeleton_based_loss1(x2_t, y2_t, max_tile_rows=512, core_split=2))
    ref2 = jax.block_until_ready(_reference(x2_t, y2_t))
    assert jnp.allclose(loss2, ref2, rtol=1e-4, atol=1e-6), (loss2, ref2)

    print("KERNEL_OK")
</pallas_src>

<mosaic_0001>
module attributes {stable_mosaic.version = 11 : i64} {
  func.func @_masked_l1_kernel(%arg0: i32, %arg1: i32, %arg2: memref<512x128xf32, #tpu.memory_space<vmem>>, %arg3: memref<512x128xf32, #tpu.memory_space<vmem>>, %arg4: memref<32x128xf32, #tpu.memory_space<vmem>>, %arg5: memref<32x128xf32, #tpu.memory_space<vmem>>) attributes {dimension_semantics = [#tpu.dimension_semantics<parallel>, #tpu.dimension_semantics<arbitrary>], iteration_bounds = array<i64: 1, 1>, scalar_prefetch = 0 : i64, scratch_operands = 0 : i64, tpu.core_type = #tpu.core_type<tc>, window_params = [{transform_indices = @transform_0, window_bounds = array<i64: 512, 128>}, {transform_indices = @transform_1, window_bounds = array<i64: 512, 128>}, {transform_indices = @transform_2, window_bounds = array<i64: 32, 128>}, {transform_indices = @transform_3, window_bounds = array<i64: 32, 128>}]} {
    %c0_i32 = arith.constant 0 : i32
    %0 = arith.cmpi eq, %arg1, %c0_i32 : i32
    %1 = arith.extui %0 : i1 to i32
    %c0_i32_0 = arith.constant 0 : i32
    %2 = arith.cmpi ne, %1, %c0_i32_0 : i32
    scf.if %2 {
      %cst_16 = arith.constant 0.000000e+00 : f32
      %29 = vector.broadcast %cst_16 : f32 to vector<32x128xf32>
      %c0_17 = arith.constant 0 : index
      %c0_18 = arith.constant 0 : index
      %30 = vector.load %arg4[%c0_17, %c0_18] : memref<32x128xf32, #tpu.memory_space<vmem>>, vector<32x128xf32>
      tpu.vector_store %arg4[%c0_17, %c0_18], %29 {strides = array<i32>} : memref<32x128xf32, #tpu.memory_space<vmem>>, vector<32x128xf32>,
      %cst_19 = arith.constant 0.000000e+00 : f32
      %31 = vector.broadcast %cst_19 : f32 to vector<32x128xf32>
      %c0_20 = arith.constant 0 : index
      %c0_21 = arith.constant 0 : index
      %32 = vector.load %arg5[%c0_20, %c0_21] : memref<32x128xf32, #tpu.memory_space<vmem>>, vector<32x128xf32>
      tpu.vector_store %arg5[%c0_20, %c0_21], %31 {strides = array<i32>} : memref<32x128xf32, #tpu.memory_space<vmem>>, vector<32x128xf32>,
    } else {
    }
    %c0_i32_1 = arith.constant 0 : i32
    %c1_i32 = arith.constant 1 : i32
    %3 = arith.muli %c0_i32_1, %c1_i32 : i32
    %c0_i32_2 = arith.constant 0 : i32
    %4 = arith.addi %c0_i32_2, %3 : i32
    %c512_i32 = arith.constant 512 : i32
    %5 = arith.muli %4, %c512_i32 : i32
    %6 = tpu.assume_multiple %5, 512 : i32
    %7 = arith.index_cast %6 : i32 to index
    %c0 = arith.constant 0 : index
    %8 = vector.load %arg2[%7, %c0] : memref<512x128xf32, #tpu.memory_space<vmem>>, vector<512x128xf32>
    %9 = arith.index_cast %6 : i32 to index
    %c0_3 = arith.constant 0 : index
    %10 = vector.load %arg3[%9, %c0_3] : memref<512x128xf32, #tpu.memory_space<vmem>>, vector<512x128xf32>
    %cst = arith.constant 0.000000e+00 : f32
    %11 = vector.broadcast %cst : f32 to vector<512x128xf32>
    %12 = arith.cmpf ogt, %10, %11 : vector<512x128xf32>
    %13 = arith.subf %8, %10 : vector<512x128xf32>
    %14 = math.absf %13 : vector<512x128xf32>
    %cst_4 = arith.constant 0.000000e+00 : f32
    %15 = vector.broadcast %cst_4 : f32 to vector<512x128xf32>
    %16 = arith.select %12, %14, %15 : vector<512x128xi1>, vector<512x128xf32>
    %17 = arith.extui %12 : vector<512x128xi1> to vector<512x128xi32>
    %18 = arith.sitofp %17 : vector<512x128xi32> to vector<512x128xf32>
    %c0_5 = arith.constant 0 : index
    %c0_6 = arith.constant 0 : index
    %19 = vector.load %arg4[%c0_5, %c0_6] : memref<32x128xf32, #tpu.memory_space<vmem>>, vector<32x128xf32>
    %20 = vector.shape_cast %16 : vector<512x128xf32> to vector<16x32x128xf32>
    %cst_7 = arith.constant dense<0.000000e+00> : vector<32x128xf32>
    %21 = vector.multi_reduction <add>, %20, %cst_7 [0] : vector<16x32x128xf32> to vector<32x128xf32>
    %22 = arith.addf %19, %21 : vector<32x128xf32>
    %c0_8 = arith.constant 0 : index
    %c0_9 = arith.constant 0 : index
    %23 = vector.load %arg4[%c0_8, %c0_9] : memref<32x128xf32, #tpu.memory_space<vmem>>, vector<32x128xf32>
    tpu.vector_store %arg4[%c0_8, %c0_9], %22 {strides = array<i32>} : memref<32x128xf32, #tpu.memory_space<vmem>>, vector<32x128xf32>,
    %c0_10 = arith.constant 0 : index
    %c0_11 = arith.constant 0 : index
    %24 = vector.load %arg5[%c0_10, %c0_11] : memref<32x128xf32, #tpu.memory_space<vmem>>, vector<32x128xf32>
    %25 = vector.shape_cast %18 : vector<512x128xf32> to vector<16x32x128xf32>
    %cst_12 = arith.constant dense<0.000000e+00> : vector<32x128xf32>
    %26 = vector.multi_reduction <add>, %25, %cst_12 [0] : vector<16x32x128xf32> to vector<32x128xf32>
    %27 = arith.addf %24, %26 : vector<32x128xf32>
    %c0_13 = arith.constant 0 : index
    %c0_14 = arith.constant 0 : index
    %28 = vector.load %arg5[%c0_13, %c0_14] : memref<32x128xf32, #tpu.memory_space<vmem>>, vector<32x128xf32>
    tpu.vector_store %arg5[%c0_13, %c0_14], %27 {strides = array<i32>} : memref<32x128xf32, #tpu.memory_space<vmem>>, vector<32x128xf32>,
    %c1_i32_15 = arith.constant 1 : i32
    return
  }
  func.func @transform_0(%arg0: i32, %arg1: i32) -> (i32, i32) {
    %c1_i32 = arith.constant 1 : i32
    %0 = arith.muli %arg0, %c1_i32 : i32
    %1 = arith.addi %0, %arg1 : i32
    %c0_i32 = arith.constant 0 : i32
    %c0_i32_0 = arith.constant 0 : i32
    return %1, %c0_i32 : i32, i32
  }
  func.func @transform_1(%arg0: i32, %arg1: i32) -> (i32, i32) {
    %c1_i32 = arith.constant 1 : i32
    %0 = arith.muli %arg0, %c1_i32 : i32
    %1 = arith.addi %0, %arg1 : i32
    %c0_i32 = arith.constant 0 : i32
    %c0_i32_0 = arith.constant 0 : i32
    return %1, %c0_i32 : i32, i32
  }
  func.func @transform_2(%arg0: i32, %arg1: i32) -> (i32, i32) {
    %c0_i32 = arith.constant 0 : i32
    %c0_i32_0 = arith.constant 0 : i32
    return %arg0, %c0_i32 : i32, i32
  }
  func.func @transform_3(%arg0: i32, %arg1: i32) -> (i32, i32) {
    %c0_i32 = arith.constant 0 : i32
    %c0_i32_0 = arith.constant 0 : i32
    return %arg0, %c0_i32 : i32, i32
  }
}

</mosaic_0001>

<llo_original>
// kernel: tpu_custom_call.1
$region0: #{tpu_custom_call.1}
  #allocation0 [shape = 'u32[]', space=smem, size = 0x4, offset = 0x4, fixed_abs, tag = 'smem constant byte address 0x4 - core index']
  #allocation1 [shape = 'u32[144,128]{1,0:T(1,128)}', space=vmem, size = 0x12000, scoped, tag = 'internal scratch']
  %s0 = inlined_call_operand.hbm [shape: f32[512,128], index: 0, kind: input, shape index: {}]
  %s1 = inlined_call_operand.hbm [shape: f32[512,128], index: 1, kind: input, shape index: {}]
  %s2 = inlined_call_operand.hbm [shape: f32[32,128], index: 2, kind: output, shape index: {0}]
  %s3 = inlined_call_operand.hbm [shape: f32[32,128], index: 3, kind: output, shape index: {1}]
  %4 = xla_tuple %s2, %s3
  %s5 = sld [smem:[#allocation0]]
  $region38: #{tpu_custom_call.1} parent=0
    _
  %s7 = ssub.s32 1, %s5
  %s8 = scalar_select 0, %s7, %s5
  $region1: #{tpu_custom_call.1} parent=0
    #allocation2 [shape = 'u8[262144]{0}', space=vmem, size = 0x40000, scoped, tag = 'input window, operand 0, single buffered']
    #allocation3 [shape = 's32[1]{0}', space=sflag, size = 0x4, scoped, tag = 'scoped memory for tpu_custom_call.1']
    #allocation4 [shape = 's32[1]{0}', space=sflag, size = 0x4, scoped, tag = 'scoped memory for tpu_custom_call.1']
    #allocation5 [shape = 'u8[262144]{0}', space=vmem, size = 0x40000, scoped, tag = 'input window, operand 1, single buffered']
    #allocation6 [shape = 's32[1]{0}', space=sflag, size = 0x4, scoped, tag = 'scoped memory for tpu_custom_call.1']
    #allocation7 [shape = 'u8[16384]{0}', space=vmem, size = 0x4000, scoped, tag = 'output window, operand 0, single buffered']
    #allocation8 [shape = 'u8[16384]{0}', space=vmem, size = 0x4000, scoped, tag = 'output window, operand 1, single buffered']
    #allocation9 [shape = 's32[1]{0}', space=sflag, size = 0x4, scoped, tag = 'scoped memory for tpu_custom_call.1']
    %9 = vsyncpa [#allocation3], 0
    %10 = vsyncpa [#allocation6], 0
    %11 = vsyncpa [#allocation4], 0
    %12 = vsyncpa [#allocation9], 0
    // Predicated region
    $region2: #{tpu_custom_call.1} parent=1 // pred_check
      _
    $region3: #{tpu_custom_call.1} parent=1 // pred_check_branch
      %14 = sbr.rel (0) target = $region5
    $region4: #{tpu_custom_call.1} parent=1 // pred_region
      %s15 = sadd.s32 0, 0
      %s16 = smul.u32 64, %s15
      %s18 = ssub.s32 8192, 8192
      %19 = vsyncadd [#allocation3], %s18
      %s20 = smul.addr %s16, 128
      %s21 = scalar_lea.hbm %s0, %s20
      %s22 = sshll.u32 [#allocation2], 4
      %s23 = int_to_ptr.vmem [resolvable:$true] %s22
      %28 = dma.hbm_to_vmem [thread:$0]  %s21, 8192, %s23, [#allocation3], 128, 128, 8
    $region5: #{tpu_custom_call.1} parent=1 // pred_fallthru
      _
    // Predicated region
    $region6: #{tpu_custom_call.1} parent=1 // pred_check
      _
    $region7: #{tpu_custom_call.1} parent=1 // pred_check_branch
      %30 = sbr.rel (0) target = $region9
    $region8: #{tpu_custom_call.1} parent=1 // pred_region
      %s31 = sadd.s32 0, 0
      %s32 = smul.u32 64, %s31
      %s34 = ssub.s32 8192, 8192
      %35 = vsyncadd [#allocation6], %s34
      %s36 = smul.addr %s32, 128
      %s37 = scalar_lea.hbm %s1, %s36
      %s38 = sshll.u32 [#allocation5], 4
      %s39 = int_to_ptr.vmem [resolvable:$true] %s38
      %44 = dma.hbm_to_vmem [thread:$0]  %s37, 8192, %s39, [#allocation6], 128, 128, 8
    $region9: #{tpu_custom_call.1} parent=1 // pred_fallthru
      _
    // Predicated region
    $region10: #{tpu_custom_call.1} parent=1 // pred_check
      _
    $region11: #{tpu_custom_call.1} parent=1 // pred_check_branch
      %46 = sbr.rel (0) target = $region13
    $region12: #{tpu_custom_call.1} parent=1 // pred_region
      %47 = dma.done [#allocation3], 8192
    $region13: #{tpu_custom_call.1} parent=1 // pred_fallthru
      _
    // Predicated region
    $region14: #{tpu_custom_call.1} parent=1 // pred_check
      _
    $region15: #{tpu_custom_call.1} parent=1 // pred_check_branch
      %49 = sbr.rel (0) target = $region17
    $region16: #{tpu_custom_call.1} parent=1 // pred_region
      %50 = dma.done [#allocation6], 8192
    $region17: #{tpu_custom_call.1} parent=1 // pred_fallthru
      _
    %s51 = sadd.s32 0, 0
    %s52 = smul.u32 64, %s51
    %s53 = sadd.s32 0, 0
    %s54 = smul.u32 64, %s53
    %p55 = scmp.eq.s32.totalorder 0, 0
    // Predicated region
    $region18: #{tpu_custom_call.1} parent=1 // pred_check
      %p56 = pneg %p55
    $region19: #{tpu_custom_call.1} parent=1 // pred_check_branch
      %58 = sbr.rel (%p56) target = $region21
    $region20: #{tpu_custom_call.1} parent=1 // pred_region
      %59 = vst [vmem:[#allocation7] sm:$0xff] 0.0
      %60 = vst [vmem:[#allocation7 + $0x8] sm:$0xff] 0.0
      %61 = vst [vmem:[#allocation7 + $0x10] sm:$0xff] 0.0
      %62 = vst [vmem:[#allocation7 + $0x18] sm:$0xff] 0.0
      %63 = vst [vmem:[#allocation8] sm:$0xff] 0.0
      %64 = vst [vmem:[#allocation8 + $0x8] sm:$0xff] 0.0
      %65 = vst [vmem:[#allocation8 + $0x10] sm:$0xff] 0.0
      %66 = vst [vmem:[#allocation8 + $0x18] sm:$0xff] 0.0
    $region21: #{tpu_custom_call.1} parent=1 // pred_fallthru
      _
    %v67 = vld [vmem:[#allocation2] sm:$0xff]
    %v68 = vld [vmem:[#allocation2 + $0x8] sm:$0xff]
    %v69 = vld [vmem:[#allocation2 + $0x10] sm:$0xff]
    %v70 = vld [vmem:[#allocation2 + $0x18] sm:$0xff]
    %v71 = vld [vmem:[#allocation2 + $0x20] sm:$0xff]
    %v72 = vld [vmem:[#allocation2 + $0x28] sm:$0xff]
    %v73 = vld [vmem:[#allocation2 + $0x30] sm:$0xff]
    %v74 = vld [vmem:[#allocation2 + $0x38] sm:$0xff]
    %v75 = vld [vmem:[#allocation2 + $0x40] sm:$0xff]
    %v76 = vld [vmem:[#allocation2 + $0x48] sm:$0xff]
    %v77 = vld [vmem:[#allocation2 + $0x50] sm:$0xff]
    %v78 = vld [vmem:[#allocation2 + $0x58] sm:$0xff]
    %v79 = vld [vmem:[#allocation2 + $0x60] sm:$0xff]
    %v80 = vld [vmem:[#allocation2 + $0x68] sm:$0xff]
    %v81 = vld [vmem:[#allocation2 + $0x70] sm:$0xff]
    %v82 = vld [vmem:[#allocation2 + $0x78] sm:$0xff]
    %v83 = vld [vmem:[#allocation2 + $0x80] sm:$0xff]
    %v84 = vld [vmem:[#allocation2 + $0x88] sm:$0xff]
    %v85 = vld [vmem:[#allocation2 + $0x90] sm:$0xff]
    %v86 = vld [vmem:[#allocation2 + $0x98] sm:$0xff]
    %v87 = vld [vmem:[#allocation2 + $0xa0] sm:$0xff]
    %v88 = vld [vmem:[#allocation2 + $0xa8] sm:$0xff]
    %v89 = vld [vmem:[#allocation2 + $0xb0] sm:$0xff]
    %v90 = vld [vmem:[#allocation2 + $0xb8] sm:$0xff]
    %v91 = vld [vmem:[#allocation2 + $0xc0] sm:$0xff]
    %v92 = vld [vmem:[#allocation2 + $0xc8] sm:$0xff]
    %v93 = vld [vmem:[#allocation2 + $0xd0] sm:$0xff]
    %v94 = vld [vmem:[#allocation2 + $0xd8] sm:$0xff]
    %v95 = vld [vmem:[#allocation2 + $0xe0] sm:$0xff]
    %v96 = vld [vmem:[#allocation2 + $0xe8] sm:$0xff]
    %v97 = vld [vmem:[#allocation2 + $0xf0] sm:$0xff]
    %v98 = vld [vmem:[#allocation2 + $0xf8] sm:$0xff]
    %v99 = vld [vmem:[#allocation2 + $0x100] sm:$0xff]
    %v100 = vld [vmem:[#allocation2 + $0x108] sm:$0xff]
    %v101 = vld [vmem:[#allocation2 + $0x110] sm:$0xff]
    %v102 = vld [vmem:[#allocation2 + $0x118] sm:$0xff]
    %v103 = vld [vmem:[#allocation2 + $0x120] sm:$0xff]
    %v104 = vld [vmem:[#allocation2 + $0x128] sm:$0xff]
    %v105 = vld [vmem:[#allocation2 + $0x130] sm:$0xff]
    %v106 = vld [vmem:[#allocation2 + $0x138] sm:$0xff]
    %v107 = vld [vmem:[#allocation2 + $0x140] sm:$0xff]
    %v108 = vld [vmem:[#allocation2 + $0x148] sm:$0xff]
    %v109 = vld [vmem:[#allocation2 + $0x150] sm:$0xff]
    %v110 = vld [vmem:[#allocation2 + $0x158] sm:$0xff]
    %v111 = vld [vmem:[#allocation2 + $0x160] sm:$0xff]
    %v112 = vld [vmem:[#allocation2 + $0x168] sm:$0xff]
    %v113 = vld [vmem:[#allocation2 + $0x170] sm:$0xff]
    %v114 = vld [vmem:[#allocation2 + $0x178] sm:$0xff]
    %v115 = vld [vmem:[#allocation2 + $0x180] sm:$0xff]
    %v116 = vld [vmem:[#allocation2 + $0x188] sm:$0xff]
    %v117 = vld [vmem:[#allocation2 + $0x190] sm:$0xff]
    %v118 = vld [vmem:[#allocation2 + $0x198] sm:$0xff]
    %v119 = vld [vmem:[#allocation2 + $0x1a0] sm:$0xff]
    %v120 = vld [vmem:[#allocation2 + $0x1a8] sm:$0xff]
    %v121 = vld [vmem:[#allocation2 + $0x1b0] sm:$0xff]
    %v122 = vld [vmem:[#allocation2 + $0x1b8] sm:$0xff]
    %v123 = vld [vmem:[#allocation2 + $0x1c0] sm:$0xff]
    %v124 = vld [vmem:[#allocation2 + $0x1c8] sm:$0xff]
    %v125 = vld [vmem:[#allocation2 + $0x1d0] sm:$0xff]
    %v126 = vld [vmem:[#allocation2 + $0x1d8] sm:$0xff]
    %v127 = vld [vmem:[#allocation2 + $0x1e0] sm:$0xff]
    %v128 = vld [vmem:[#allocation2 + $0x1e8] sm:$0xff]
    %v129 = vld [vmem:[#allocation2 + $0x1f0] sm:$0xff]
    %v130 = vld [vmem:[#allocation2 + $0x1f8] sm:$0xff]
    %v131 = vld [vmem:[#allocation5] sm:$0xff]
    %v132 = vld [vmem:[#allocation5 + $0x8] sm:$0xff]
    %v133 = vld [vmem:[#allocation5 + $0x10] sm:$0xff]
    %v134 = vld [vmem:[#allocation5 + $0x18] sm:$0xff]
    %v135 = vld [vmem:[#allocation5 + $0x20] sm:$0xff]
    %v136 = vld [vmem:[#allocation5 + $0x28] sm:$0xff]
    %v137 = vld [vmem:[#allocation5 + $0x30] sm:$0xff]
    %v138 = vld [vmem:[#allocation5 + $0x38] sm:$0xff]
    %v139 = vld [vmem:[#allocation5 + $0x40] sm:$0xff]
    %v140 = vld [vmem:[#allocation5 + $0x48] sm:$0xff]
    %v141 = vld [vmem:[#allocation5 + $0x50] sm:$0xff]
    %v142 = vld [vmem:[#allocation5 + $0x58] sm:$0xff]
    %v143 = vld [vmem:[#allocation5 + $0x60] sm:$0xff]
    %v144 = vld [vmem:[#allocation5 + $0x68] sm:$0xff]
    %v145 = vld [vmem:[#allocation5 + $0x70] sm:$0xff]
    %v146 = vld [vmem:[#allocation5 + $0x78] sm:$0xff]
    %v147 = vld [vmem:[#allocation5 + $0x80] sm:$0xff]
    %v148 = vld [vmem:[#allocation5 + $0x88] sm:$0xff]
    %v149 = vld [vmem:[#allocation5 + $0x90] sm:$0xff]
    %v150 = vld [vmem:[#allocation5 + $0x98] sm:$0xff]
    %v151 = vld [vmem:[#allocation5 + $0xa0] sm:$0xff]
    %v152 = vld [vmem:[#allocation5 + $0xa8] sm:$0xff]
    %v153 = vld [vmem:[#allocation5 + $0xb0] sm:$0xff]
    %v154 = vld [vmem:[#allocation5 + $0xb8] sm:$0xff]
    %v155 = vld [vmem:[#allocation5 + $0xc0] sm:$0xff]
    %v156 = vld [vmem:[#allocation5 + $0xc8] sm:$0xff]
    %v157 = vld [vmem:[#allocation5 + $0xd0] sm:$0xff]
    %v158 = vld [vmem:[#allocation5 + $0xd8] sm:$0xff]
    %v159 = vld [vmem:[#allocation5 + $0xe0] sm:$0xff]
    %v160 = vld [vmem:[#allocation5 + $0xe8] sm:$0xff]
    %v161 = vld [vmem:[#allocation5 + $0xf0] sm:$0xff]
    %v162 = vld [vmem:[#allocation5 + $0xf8] sm:$0xff]
    %v163 = vld [vmem:[#allocation5 + $0x100] sm:$0xff]
    %v164 = vld [vmem:[#allocation5 + $0x108] sm:$0xff]
    %v165 = vld [vmem:[#allocation5 + $0x110] sm:$0xff]
    %v166 = vld [vmem:[#allocation5 + $0x118] sm:$0xff]
    %v167 = vld [vmem:[#allocation5 + $0x120] sm:$0xff]
    %v168 = vld [vmem:[#allocation5 + $0x128] sm:$0xff]
    %v169 = vld [vmem:[#allocation5 + $0x130] sm:$0xff]
    %v170 = vld [vmem:[#allocation5 + $0x138] sm:$0xff]
    %v171 = vld [vmem:[#allocation5 + $0x140] sm:$0xff]
    %v172 = vld [vmem:[#allocation5 + $0x148] sm:$0xff]
    %v173 = vld [vmem:[#allocation5 + $0x150] sm:$0xff]
    %v174 = vld [vmem:[#allocation5 + $0x158] sm:$0xff]
    %v175 = vld [vmem:[#allocation5 + $0x160] sm:$0xff]
    %v176 = vld [vmem:[#allocation5 + $0x168] sm:$0xff]
    %v177 = vld [vmem:[#allocation5 + $0x170] sm:$0xff]
    %v178 = vld [vmem:[#allocation5 + $0x178] sm:$0xff]
    %v179 = vld [vmem:[#allocation5 + $0x180] sm:$0xff]
    %v180 = vld [vmem:[#allocation5 + $0x188] sm:$0xff]
    %v181 = vld [vmem:[#allocation5 + $0x190] sm:$0xff]
    %v182 = vld [vmem:[#allocation5 + $0x198] sm:$0xff]
    %v183 = vld [vmem:[#allocation5 + $0x1a0] sm:$0xff]
    %v184 = vld [vmem:[#allocation5 + $0x1a8] sm:$0xff]
    %v185 = vld [vmem:[#allocation5 + $0x1b0] sm:$0xff]
    %v186 = vld [vmem:[#allocation5 + $0x1b8] sm:$0xff]
    %v187 = vld [vmem:[#allocation5 + $0x1c0] sm:$0xff]
    %v188 = vld [vmem:[#allocation5 + $0x1c8] sm:$0xff]
    %v189 = vld [vmem:[#allocation5 + $0x1d0] sm:$0xff]
    %v190 = vld [vmem:[#allocation5 + $0x1d8] sm:$0xff]
    %v191 = vld [vmem:[#allocation5 + $0x1e0] sm:$0xff]
    %v192 = vld [vmem:[#allocation5 + $0x1e8] sm:$0xff]
    %v193 = vld [vmem:[#allocation5 + $0x1f0] sm:$0xff]
    %v194 = vld [vmem:[#allocation5 + $0x1f8] sm:$0xff]
    %vm195 = vcmp.gt.f32.partialorder %v131, 0.0
    %vm196 = vcmp.gt.f32.partialorder %v132, 0.0
    %vm197 = vcmp.gt.f32.partialorder %v133, 0.0
    %vm198 = vcmp.gt.f32.partialorder %v134, 0.0
    %vm199 = vcmp.gt.f32.partialorder %v135, 0.0
    %vm200 = vcmp.gt.f32.partialorder %v136, 0.0
    %vm201 = vcmp.gt.f32.partialorder %v137, 0.0
    %vm202 = vcmp.gt.f32.partialorder %v138, 0.0
    %vm203 = vcmp.gt.f32.partialorder %v139, 0.0
    %vm204 = vcmp.gt.f32.partialorder %v140, 0.0
    %vm205 = vcmp.gt.f32.partialorder %v141, 0.0
    %vm206 = vcmp.gt.f32.partialorder %v142, 0.0
    %vm207 = vcmp.gt.f32.partialorder %v143, 0.0
    %vm208 = vcmp.gt.f32.partialorder %v144, 0.0
    %vm209 = vcmp.gt.f32.partialorder %v145, 0.0
    %vm210 = vcmp.gt.f32.partialorder %v146, 0.0
    %vm211 = vcmp.gt.f32.partialorder %v147, 0.0
    %vm212 = vcmp.gt.f32.partialorder %v148, 0.0
    %vm213 = vcmp.gt.f32.partialorder %v149, 0.0
    %vm214 = vcmp.gt.f32.partialorder %v150, 0.0
    %vm215 = vcmp.gt.f32.partialorder %v151, 0.0
    %vm216 = vcmp.gt.f32.partialorder %v152, 0.0
    %vm217 = vcmp.gt.f32.partialorder %v153, 0.0
    %vm218 = vcmp.gt.f32.partialorder %v154, 0.0
    %vm219 = vcmp.gt.f32.partialorder %v155, 0.0
    %vm220 = vcmp.gt.f32.partialorder %v156, 0.0
    %vm221 = vcmp.gt.f32.partialorder %v157, 0.0
    %vm222 = vcmp.gt.f32.partialorder %v158, 0.0
    %vm223 = vcmp.gt.f32.partialorder %v159, 0.0
    %vm224 = vcmp.gt.f32.partialorder %v160, 0.0
    %vm225 = vcmp.gt.f32.partialorder %v161, 0.0
    %vm226 = vcmp.gt.f32.partialorder %v162, 0.0
    %vm227 = vcmp.gt.f32.partialorder %v163, 0.0
    %vm228 = vcmp.gt.f32.partialorder %v164, 0.0
    %vm229 = vcmp.gt.f32.partialorder %v165, 0.0
    %vm230 = vcmp.gt.f32.partialorder %v166, 0.0
    %vm231 = vcmp.gt.f32.partialorder %v167, 0.0
    %vm232 = vcmp.gt.f32.partialorder %v168, 0.0
    %vm233 = vcmp.gt.f32.partialorder %v169, 0.0
    %vm234 = vcmp.gt.f32.partialorder %v170, 0.0
    %vm235 = vcmp.gt.f32.partialorder %v171, 0.0
    %vm236 = vcmp.gt.f32.partialorder %v172, 0.0
    %vm237 = vcmp.gt.f32.partialorder %v173, 0.0
    %vm238 = vcmp.gt.f32.partialorder %v174, 0.0
    %vm239 = vcmp.gt.f32.partialorder %v175, 0.0
    %vm240 = vcmp.gt.f32.partialorder %v176, 0.0
    %vm241 = vcmp.gt.f32.partialorder %v177, 0.0
    %vm242 = vcmp.gt.f32.partialorder %v178, 0.0
    %vm243 = vcmp.gt.f32.partialorder %v179, 0.0
    %vm244 = vcmp.gt.f32.partialorder %v180, 0.0
    %vm245 = vcmp.gt.f32.partialorder %v181, 0.0
    %vm246 = vcmp.gt.f32.partialorder %v182, 0.0
    %vm247 = vcmp.gt.f32.partialorder %v183, 0.0
    %vm248 = vcmp.gt.f32.partialorder %v184, 0.0
    %vm249 = vcmp.gt.f32.partialorder %v185, 0.0
    %vm250 = vcmp.gt.f32.partialorder %v186, 0.0
    %vm251 = vcmp.gt.f32.partialorder %v187, 0.0
    %vm252 = vcmp.gt.f32.partialorder %v188, 0.0
    %vm253 = vcmp.gt.f32.partialorder %v189, 0.0
    %vm254 = vcmp.gt.f32.partialorder %v190, 0.0
    %vm255 = vcmp.gt.f32.partialorder %v191, 0.0
    %vm256 = vcmp.gt.f32.partialorder %v192, 0.0
    %vm257 = vcmp.gt.f32.partialorder %v193, 0.0
    %vm258 = vcmp.gt.f32.partialorder %v194, 0.0
    %v259 = vsub.f32 %v67, %v131
    %v260 = vsub.f32 %v68, %v132
    %v261 = vsub.f32 %v69, %v133
    %v262 = vsub.f32 %v70, %v134
    %v263 = vsub.f32 %v71, %v135
    %v264 = vsub.f32 %v72, %v136
    %v265 = vsub.f32 %v73, %v137
    %v266 = vsub.f32 %v74, %v138
    %v267 = vsub.f32 %v75, %v139
    %v268 = vsub.f32 %v76, %v140
    %v269 = vsub.f32 %v77, %v141
    %v270 = vsub.f32 %v78, %v142
    %v271 = vsub.f32 %v79, %v143
    %v272 = vsub.f32 %v80, %v144
    %v273 = vsub.f32 %v81, %v145
    %v274 = vsub.f32 %v82, %v146
    %v275 = vsub.f32 %v83, %v147
    %v276 = vsub.f32 %v84, %v148
    %v277 = vsub.f32 %v85, %v149
    %v278 = vsub.f32 %v86, %v150
    %v279 = vsub.f32 %v87, %v151
    %v280 = vsub.f32 %v88, %v152
    %v281 = vsub.f32 %v89, %v153
    %v282 = vsub.f32 %v90, %v154
    %v283 = vsub.f32 %v91, %v155
    %v284 = vsub.f32 %v92, %v156
    %v285 = vsub.f32 %v93, %v157
    %v286 = vsub.f32 %v94, %v158
    %v287 = vsub.f32 %v95, %v159
    %v288 = vsub.f32 %v96, %v160
    %v289 = vsub.f32 %v97, %v161
    %v290 = vsub.f32 %v98, %v162
    %v291 = vsub.f32 %v99, %v163
    %v292 = vsub.f32 %v100, %v164
    %v293 = vsub.f32 %v101, %v165
    %v294 = vsub.f32 %v102, %v166
    %v295 = vsub.f32 %v103, %v167
    %v296 = vsub.f32 %v104, %v168
    %v297 = vsub.f32 %v105, %v169
    %v298 = vsub.f32 %v106, %v170
    %v299 = vsub.f32 %v107, %v171
    %v300 = vsub.f32 %v108, %v172
    %v301 = vsub.f32 %v109, %v173
    %v302 = vsub.f32 %v110, %v174
    %v303 = vsub.f32 %v111, %v175
    %v304 = vsub.f32 %v112, %v176
    %v305 = vsub.f32 %v113, %v177
    %v306 = vsub.f32 %v114, %v178
    %v307 = vsub.f32 %v115, %v179
    %v308 = vsub.f32 %v116, %v180
    %v309 = vsub.f32 %v117, %v181
    %v310 = vsub.f32 %v118, %v182
    %v311 = vsub.f32 %v119, %v183
    %v312 = vsub.f32 %v120, %v184
    %v313 = vsub.f32 %v121, %v185
    %v314 = vsub.f32 %v122, %v186
    %v315 = vsub.f32 %v123, %v187
    %v316 = vsub.f32 %v124, %v188
    %v317 = vsub.f32 %v125, %v189
    %v318 = vsub.f32 %v126, %v190
    %v319 = vsub.f32 %v127, %v191
    %v320 = vsub.f32 %v128, %v192
    %v321 = vsub.f32 %v129, %v193
    %v322 = vsub.f32 %v130, %v194
    %v323 = vand.u32 2147483647, %v259
    %v324 = vand.u32 2147483647, %v260
    %v325 = vand.u32 2147483647, %v261
    %v326 = vand.u32 2147483647, %v262
    %v327 = vand.u32 2147483647, %v263
    %v328 = vand.u32 2147483647, %v264
    %v329 = vand.u32 2147483647, %v265
    %v330 = vand.u32 2147483647, %v266
    %v331 = vand.u32 2147483647, %v267
    %v332 = vand.u32 2147483647, %v268
    %v333 = vand.u32 2147483647, %v269
    %v334 = vand.u32 2147483647, %v270
    %v335 = vand.u32 2147483647, %v271
    %v336 = vand.u32 2147483647, %v272
    %v337 = vand.u32 2147483647, %v273
    %v338 = vand.u32 2147483647, %v274
    %v339 = vand.u32 2147483647, %v275
    %v340 = vand.u32 2147483647, %v276
    %v341 = vand.u32 2147483647, %v277
    %v342 = vand.u32 2147483647, %v278
    %v343 = vand.u32 2147483647, %v279
    %v344 = vand.u32 2147483647, %v280
    %v345 = vand.u32 2147483647, %v281
    %v346 = vand.u32 2147483647, %v282
    %v347 = vand.u32 2147483647, %v283
    %v348 = vand.u32 2147483647, %v284
    %v349 = vand.u32 2147483647, %v285
    %v350 = vand.u32 2147483647, %v286
    %v351 = vand.u32 2147483647, %v287
    %v352 = vand.u32 2147483647, %v288
    %v353 = vand.u32 2147483647, %v289
    %v354 = vand.u32 2147483647, %v290
    %v355 = vand.u32 2147483647, %v291
    %v356 = vand.u32 2147483647, %v292
    %v357 = vand.u32 2147483647, %v293
    %v358 = vand.u32 2147483647, %v294
    %v359 = vand.u32 2147483647, %v295
    %v360 = vand.u32 2147483647, %v296
    %v361 = vand.u32 2147483647, %v297
    %v362 = vand.u32 2147483647, %v298
    %v363 = vand.u32 2147483647, %v299
    %v364 = vand.u32 2147483647, %v300
    %v365 = vand.u32 2147483647, %v301
    %v366 = vand.u32 2147483647, %v302
    %v367 = vand.u32 2147483647, %v303
    %v368 = vand.u32 2147483647, %v304
    %v369 = vand.u32 2147483647, %v305
    %v370 = vand.u32 2147483647, %v306
    %v371 = vand.u32 2147483647, %v307
    %v372 = vand.u32 2147483647, %v308
    %v373 = vand.u32 2147483647, %v309
    %v374 = vand.u32 2147483647, %v310
    %v375 = vand.u32 2147483647, %v311
    %v376 = vand.u32 2147483647, %v312
    %v377 = vand.u32 2147483647, %v313
    %v378 = vand.u32 2147483647, %v314
    %v379 = vand.u32 2147483647, %v315
    %v380 = vand.u32 2147483647, %v316
    %v381 = vand.u32 2147483647, %v317
    %v382 = vand.u32 2147483647, %v318
    %v383 = vand.u32 2147483647, %v319
    %v384 = vand.u32 2147483647, %v320
    %v385 = vand.u32 2147483647, %v321
    %v386 = vand.u32 2147483647, %v322
    %v387 = vsel %vm195, %v323, 0.0
    %v388 = vsel %vm196, %v324, 0.0
    %v389 = vsel %vm197, %v325, 0.0
    %v390 = vsel %vm198, %v326, 0.0
    %v391 = vsel %vm199, %v327, 0.0
    %v392 = vsel %vm200, %v328, 0.0
    %v393 = vsel %vm201, %v329, 0.0
    %v394 = vsel %vm202, %v330, 0.0
    %v395 = vsel %vm203, %v331, 0.0
    %v396 = vsel %vm204, %v332, 0.0
    %v397 = vsel %vm205, %v333, 0.0
    %v398 = vsel %vm206, %v334, 0.0
    %v399 = vsel %vm207, %v335, 0.0
    %v400 = vsel %vm208, %v336, 0.0
    %v401 = vsel %vm209, %v337, 0.0
    %v402 = vsel %vm210, %v338, 0.0
    %v403 = vsel %vm211, %v339, 0.0
    %v404 = vsel %vm212, %v340, 0.0
    %v405 = vsel %vm213, %v341, 0.0
    %v406 = vsel %vm214, %v342, 0.0
    %v407 = vsel %vm215, %v343, 0.0
    %v408 = vsel %vm216, %v344, 0.0
    %v409 = vsel %vm217, %v345, 0.0
    %v410 = vsel %vm218, %v346, 0.0
    %v411 = vsel %vm219, %v347, 0.0
    %v412 = vsel %vm220, %v348, 0.0
    %v413 = vsel %vm221, %v349, 0.0
    %v414 = vsel %vm222, %v350, 0.0
    %v415 = vsel %vm223, %v351, 0.0
    %v416 = vsel %vm224, %v352, 0.0
    %v417 = vsel %vm225, %v353, 0.0
    %v418 = vsel %vm226, %v354, 0.0
    %v419 = vsel %vm227, %v355, 0.0
    %v420 = vsel %vm228, %v356, 0.0
    %v421 = vsel %vm229, %v357, 0.0
    %v422 = vsel %vm230, %v358, 0.0
    %v423 = vsel %vm231, %v359, 0.0
    %v424 = vsel %vm232, %v360, 0.0
    %v425 = vsel %vm233, %v361, 0.0
    %v426 = vsel %vm234, %v362, 0.0
    %v427 = vsel %vm235, %v363, 0.0
    %v428 = vsel %vm236, %v364, 0.0
    %v429 = vsel %vm237, %v365, 0.0
    %v430 = vsel %vm238, %v366, 0.0
    %v431 = vsel %vm239, %v367, 0.0
    %v432 = vsel %vm240, %v368, 0.0
    %v433 = vsel %vm241, %v369, 0.0
    %v434 = vsel %vm242, %v370, 0.0
    %v435 = vsel %vm243, %v371, 0.0
    %v436 = vsel %vm244, %v372, 0.0
    %v437 = vsel %vm245, %v373, 0.0
    %v438 = vsel %vm246, %v374, 0.0
    %v439 = vsel %vm247, %v375, 0.0
    %v440 = vsel %vm248, %v376, 0.0
    %v441 = vsel %vm249, %v377, 0.0
    %v442 = vsel %vm250, %v378, 0.0
    %v443 = vsel %vm251, %v379, 0.0
    %v444 = vsel %vm252, %v380, 0.0
    %v445 = vsel %vm253, %v381, 0.0
    %v446 = vsel %vm254, %v382, 0.0
    %v447 = vsel %vm255, %v383, 0.0
    %v448 = vsel %vm256, %v384, 0.0
    %v449 = vsel %vm257, %v385, 0.0
    %v450 = vsel %vm258, %v386, 0.0
    %v451 = vsel %vm195, 1, 0
    %v452 = vsel %vm196, 1, 0
    %v453 = vsel %vm197, 1, 0
    %v454 = vsel %vm198, 1, 0
    %v455 = vsel %vm199, 1, 0
    %v456 = vsel %vm200, 1, 0
    %v457 = vsel %vm201, 1, 0
    %v458 = vsel %vm202, 1, 0
    %v459 = vsel %vm203, 1, 0
    %v460 = vsel %vm204, 1, 0
    %v461 = vsel %vm205, 1, 0
    %v462 = vsel %vm206, 1, 0
    %v463 = vsel %vm207, 1, 0
    %v464 = vsel %vm208, 1, 0
    %v465 = vsel %vm209, 1, 0
    %v466 = vsel %vm210, 1, 0
    %v467 = vsel %vm211, 1, 0
    %v468 = vsel %vm212, 1, 0
    %v469 = vsel %vm213, 1, 0
    %v470 = vsel %vm214, 1, 0
    %v471 = vsel %vm215, 1, 0
    %v472 = vsel %vm216, 1, 0
    %v473 = vsel %vm217, 1, 0
    %v474 = vsel %vm218, 1, 0
    %v475 = vsel %vm219, 1, 0
    %v476 = vsel %vm220, 1, 0
    %v477 = vsel %vm221, 1, 0
    %v478 = vsel %vm222, 1, 0
    %v479 = vsel %vm223, 1, 0
    %v480 = vsel %vm224, 1, 0
    %v481 = vsel %vm225, 1, 0
    %v482 = vsel %vm226, 1, 0
    %v483 = vsel %vm227, 1, 0
    %v484 = vsel %vm228, 1, 0
    %v485 = vsel %vm229, 1, 0
    %v486 = vsel %vm230, 1, 0
    %v487 = vsel %vm231, 1, 0
    %v488 = vsel %vm232, 1, 0
    %v489 = vsel %vm233, 1, 0
    %v490 = vsel %vm234, 1, 0
    %v491 = vsel %vm235, 1, 0
    %v492 = vsel %vm236, 1, 0
    %v493 = vsel %vm237, 1, 0
    %v494 = vsel %vm238, 1, 0
    %v495 = vsel %vm239, 1, 0
    %v496 = vsel %vm240, 1, 0
    %v497 = vsel %vm241, 1, 0
    %v498 = vsel %vm242, 1, 0
    %v499 = vsel %vm243, 1, 0
    %v500 = vsel %vm244, 1, 0
    %v501 = vsel %vm245, 1, 0
    %v502 = vsel %vm246, 1, 0
    %v503 = vsel %vm247, 1, 0
    %v504 = vsel %vm248, 1, 0
    %v505 = vsel %vm249, 1, 0
    %v506 = vsel %vm250, 1, 0
    %v507 = vsel %vm251, 1, 0
    %v508 = vsel %vm252, 1, 0
    %v509 = vsel %vm253, 1, 0
    %v510 = vsel %vm254, 1, 0
    %v511 = vsel %vm255, 1, 0
    %v512 = vsel %vm256, 1, 0
    %v513 = vsel %vm257, 1, 0
    %v514 = vsel %vm258, 1, 0
    %v515 = vcvt.s32.f32 %v451
    %v516 = vcvt.s32.f32 %v452
    %v517 = vcvt.s32.f32 %v453
    %v518 = vcvt.s32.f32 %v454
    %v519 = vcvt.s32.f32 %v455
    %v520 = vcvt.s32.f32 %v456
    %v521 = vcvt.s32.f32 %v457
    %v522 = vcvt.s32.f32 %v458
    %v523 = vcvt.s32.f32 %v459
    %v524 = vcvt.s32.f32 %v460
    %v525 = vcvt.s32.f32 %v461
    %v526 = vcvt.s32.f32 %v462
    %v527 = vcvt.s32.f32 %v463
    %v528 = vcvt.s32.f32 %v464
    %v529 = vcvt.s32.f32 %v465
    %v530 = vcvt.s32.f32 %v466
    %v531 = vcvt.s32.f32 %v467
    %v532 = vcvt.s32.f32 %v468
    %v533 = vcvt.s32.f32 %v469
    %v534 = vcvt.s32.f32 %v470
    %v535 = vcvt.s32.f32 %v471
    %v536 = vcvt.s32.f32 %v472
    %v537 = vcvt.s32.f32 %v473
    %v538 = vcvt.s32.f32 %v474
    %v539 = vcvt.s32.f32 %v475
    %v540 = vcvt.s32.f32 %v476
    %v541 = vcvt.s32.f32 %v477
    %v542 = vcvt.s32.f32 %v478
    %v543 = vcvt.s32.f32 %v479
    %v544 = vcvt.s32.f32 %v480
    %v545 = vcvt.s32.f32 %v481
    %v546 = vcvt.s32.f32 %v482
    %v547 = vcvt.s32.f32 %v483
    %v548 = vcvt.s32.f32 %v484
    %v549 = vcvt.s32.f32 %v485
    %v550 = vcvt.s32.f32 %v486
    %v551 = vcvt.s32.f32 %v487
    %v552 = vcvt.s32.f32 %v488
    %v553 = vcvt.s32.f32 %v489
    %v554 = vcvt.s32.f32 %v490
    %v555 = vcvt.s32.f32 %v491
    %v556 = vcvt.s32.f32 %v492
    %v557 = vcvt.s32.f32 %v493
    %v558 = vcvt.s32.f32 %v494
    %v559 = vcvt.s32.f32 %v495
    %v560 = vcvt.s32.f32 %v496
    %v561 = vcvt.s32.f32 %v497
    %v562 = vcvt.s32.f32 %v498
    %v563 = vcvt.s32.f32 %v499
    %v564 = vcvt.s32.f32 %v500
    %v565 = vcvt.s32.f32 %v501
    %v566 = vcvt.s32.f32 %v502
    %v567 = vcvt.s32.f32 %v503
    %v568 = vcvt.s32.f32 %v504
    %v569 = vcvt.s32.f32 %v505
    %v570 = vcvt.s32.f32 %v506
    %v571 = vcvt.s32.f32 %v507
    %v572 = vcvt.s32.f32 %v508
    %v573 = vcvt.s32.f32 %v509
    %v574 = vcvt.s32.f32 %v510
    %v575 = vcvt.s32.f32 %v511
    %v576 = vcvt.s32.f32 %v512
    %v577 = vcvt.s32.f32 %v513
    %v578 = vcvt.s32.f32 %v514
    %v579 = vld [vmem:[#allocation7] sm:$0xff]
    %v580 = vld [vmem:[#allocation7 + $0x8] sm:$0xff]
    %v581 = vld [vmem:[#allocation7 + $0x10] sm:$0xff]
    %v582 = vld [vmem:[#allocation7 + $0x18] sm:$0xff]
    %v583 = vadd.f32 %v387, %v391
    %v584 = vadd.f32 %v583, %v395
    %v585 = vadd.f32 %v584, %v399
    %v586 = vadd.f32 %v585, %v403
    %v587 = vadd.f32 %v586, %v407
    %v588 = vadd.f32 %v587, %v411
    %v589 = vadd.f32 %v588, %v415
    %v590 = vadd.f32 %v589, %v419
    %v591 = vadd.f32 %v590, %v423
    %v592 = vadd.f32 %v591, %v427
    %v593 = vadd.f32 %v592, %v431
    %v594 = vadd.f32 %v593, %v435
    %v595 = vadd.f32 %v594, %v439
    %v596 = vadd.f32 %v595, %v443
    %v597 = vadd.f32 %v596, %v447
    %v598 = vadd.f32 %v388, %v392
    %v599 = vadd.f32 %v598, %v396
    %v600 = vadd.f32 %v599, %v400
    %v601 = vadd.f32 %v600, %v404
    %v602 = vadd.f32 %v601, %v408
    %v603 = vadd.f32 %v602, %v412
    %v604 = vadd.f32 %v603, %v416
    %v605 = vadd.f32 %v604, %v420
    %v606 = vadd.f32 %v605, %v424
    %v607 = vadd.f32 %v606, %v428
    %v608 = vadd.f32 %v607, %v432
    %v609 = vadd.f32 %v608, %v436
    %v610 = vadd.f32 %v609, %v440
    %v611 = vadd.f32 %v610, %v444
    %v612 = vadd.f32 %v611, %v448
    %v613 = vadd.f32 %v389, %v393
    %v614 = vadd.f32 %v613, %v397
    %v615 = vadd.f32 %v614, %v401
    %v616 = vadd.f32 %v615, %v405
    %v617 = vadd.f32 %v616, %v409
    %v618 = vadd.f32 %v617, %v413
    %v619 = vadd.f32 %v618, %v417
    %v620 = vadd.f32 %v619, %v421
    %v621 = vadd.f32 %v620, %v425
    %v622 = vadd.f32 %v621, %v429
    %v623 = vadd.f32 %v622, %v433
    %v624 = vadd.f32 %v623, %v437
    %v625 = vadd.f32 %v624, %v441
    %v626 = vadd.f32 %v625, %v445
    %v627 = vadd.f32 %v626, %v449
    %v628 = vadd.f32 %v390, %v394
    %v629 = vadd.f32 %v628, %v398
    %v630 = vadd.f32 %v629, %v402
    %v631 = vadd.f32 %v630, %v406
    %v632 = vadd.f32 %v631, %v410
    %v633 = vadd.f32 %v632, %v414
    %v634 = vadd.f32 %v633, %v418
    %v635 = vadd.f32 %v634, %v422
    %v636 = vadd.f32 %v635, %v426
    %v637 = vadd.f32 %v636, %v430
    %v638 = vadd.f32 %v637, %v434
    %v639 = vadd.f32 %v638, %v438
    %v640 = vadd.f32 %v639, %v442
    %v641 = vadd.f32 %v640, %v446
    %v642 = vadd.f32 %v641, %v450
    %v643 = vadd.f32 %v579, %v597
    %v644 = vadd.f32 %v580, %v612
    %v645 = vadd.f32 %v581, %v627
    %v646 = vadd.f32 %v582, %v642
    %647 = vst [vmem:[#allocation7] sm:$0xff] %v643
    %648 = vst [vmem:[#allocation7 + $0x8] sm:$0xff] %v644
    %649 = vst [vmem:[#allocation7 + $0x10] sm:$0xff] %v645
    %650 = vst [vmem:[#allocation7 + $0x18] sm:$0xff] %v646
    %v651 = vld [vmem:[#allocation8] sm:$0xff]
    %v652 = vld [vmem:[#allocation8 + $0x8] sm:$0xff]
    %v653 = vld [vmem:[#allocation8 + $0x10] sm:$0xff]
    %v654 = vld [vmem:[#allocation8 + $0x18] sm:$0xff]
    %v655 = vadd.f32 %v515, %v519
    %v656 = vadd.f32 %v655, %v523
    %v657 = vadd.f32 %v656, %v527
    %v658 = vadd.f32 %v657, %v531
    %v659 = vadd.f32 %v658, %v535
    %v660 = vadd.f32 %v659, %v539
    %v661 = vadd.f32 %v660, %v543
    %v662 = vadd.f32 %v661, %v547
    %v663 = vadd.f32 %v662, %v551
    %v664 = vadd.f32 %v663, %v555
    %v665 = vadd.f32 %v664, %v559
    %v666 = vadd.f32 %v665, %v563
    %v667 = vadd.f32 %v666, %v567
    %v668 = vadd.f32 %v667, %v571
    %v669 = vadd.f32 %v668, %v575
    %v670 = vadd.f32 %v516, %v520
    %v671 = vadd.f32 %v670, %v524
    %v672 = vadd.f32 %v671, %v528
    %v673 = vadd.f32 %v672, %v532
    %v674 = vadd.f32 %v673, %v536
    %v675 = vadd.f32 %v674, %v540
    %v676 = vadd.f32 %v675, %v544
    %v677 = vadd.f32 %v676, %v548
    %v678 = vadd.f32 %v677, %v552
    %v679 = vadd.f32 %v678, %v556
    %v680 = vadd.f32 %v679, %v560
    %v681 = vadd.f32 %v680, %v564
    %v682 = vadd.f32 %v681, %v568
    %v683 = vadd.f32 %v682, %v572
    %v684 = vadd.f32 %v683, %v576
    %v685 = vadd.f32 %v517, %v521
    %v686 = vadd.f32 %v685, %v525
    %v687 = vadd.f32 %v686, %v529
    %v688 = vadd.f32 %v687, %v533
    %v689 = vadd.f32 %v688, %v537
    %v690 = vadd.f32 %v689, %v541
    %v691 = vadd.f32 %v690, %v545
    %v692 = vadd.f32 %v691, %v549
    %v693 = vadd.f32 %v692, %v553
    %v694 = vadd.f32 %v693, %v557
    %v695 = vadd.f32 %v694, %v561
    %v696 = vadd.f32 %v695, %v565
    %v697 = vadd.f32 %v696, %v569
    %v698 = vadd.f32 %v697, %v573
    %v699 = vadd.f32 %v698, %v577
    %v700 = vadd.f32 %v518, %v522
    %v701 = vadd.f32 %v700, %v526
    %v702 = vadd.f32 %v701, %v530
    %v703 = vadd.f32 %v702, %v534
    %v704 = vadd.f32 %v703, %v538
    %v705 = vadd.f32 %v704, %v542
    %v706 = vadd.f32 %v705, %v546
    %v707 = vadd.f32 %v706, %v550
    %v708 = vadd.f32 %v707, %v554
    %v709 = vadd.f32 %v708, %v558
    %v710 = vadd.f32 %v709, %v562
    %v711 = vadd.f32 %v710, %v566
    %v712 = vadd.f32 %v711, %v570
    %v713 = vadd.f32 %v712, %v574
    %v714 = vadd.f32 %v713, %v578
    %v715 = vadd.f32 %v651, %v669
    %v716 = vadd.f32 %v652, %v684
    %v717 = vadd.f32 %v653, %v699
    %v718 = vadd.f32 %v654, %v714
    %719 = vst [vmem:[#allocation8] sm:$0xff] %v715
    %720 = vst [vmem:[#allocation8 + $0x8] sm:$0xff] %v716
    %721 = vst [vmem:[#allocation8 + $0x10] sm:$0xff] %v717
    %722 = vst [vmem:[#allocation8 + $0x18] sm:$0xff] %v718
    // Predicated region
    $region22: #{tpu_custom_call.1} parent=1 // pred_check
      _
    $region23: #{tpu_custom_call.1} parent=1 // pred_check_branch
      %724 = sbr.rel (0) target = $region25
    $region24: #{tpu_custom_call.1} parent=1 // pred_region
      %s726 = ssub.s32 512, 512
      %727 = vsyncadd [#allocation4], %s726
      %s728 = sshll.u32 [#allocation7], 4
      %s729 = int_to_ptr.vmem [resolvable:$true] %s728
      %734 = dma.vmem_to_hbm [thread:$0]  %s729, 512, %s2, [#allocation4], 128, 128, 8
    $region25: #{tpu_custom_call.1} parent=1 // pred_fallthru
      _
    // Predicated region
    $region26: #{tpu_custom_call.1} parent=1 // pred_check
      _
    $region27: #{tpu_custom_call.1} parent=1 // pred_check_branch
      %736 = sbr.rel (0) target = $region29
    $region28: #{tpu_custom_call.1} parent=1 // pred_region
      %s738 = ssub.s32 512, 512
      %739 = vsyncadd [#allocation9], %s738
      %s740 = sshll.u32 [#allocation8], 4
      %s741 = int_to_ptr.vmem [resolvable:$true] %s740
      %746 = dma.vmem_to_hbm [thread:$0]  %s741, 512, %s3, [#allocation9], 128, 128, 8
    $region29: #{tpu_custom_call.1} parent=1 // pred_fallthru
      _
    // Predicated region
    $region30: #{tpu_custom_call.1} parent=1 // pred_check
      _
    $region31: #{tpu_custom_call.1} parent=1 // pred_check_branch
      %748 = sbr.rel (0) target = $region33
    $region32: #{tpu_custom_call.1} parent=1 // pred_region
      %749 = dma.done [#allocation4], 512
    $region33: #{tpu_custom_call.1} parent=1 // pred_fallthru
      _
    // Predicated region
    $region34: #{tpu_custom_call.1} parent=1 // pred_check
      _
    $region35: #{tpu_custom_call.1} parent=1 // pred_check_branch
      %751 = sbr.rel (0) target = $region37
    $region36: #{tpu_custom_call.1} parent=1 // pred_region
      %752 = dma.done [#allocation9], 512
    $region37: #{tpu_custom_call.1} parent=1 // pred_fallthru
      _
    %753 = vsyncpa [#allocation3], 1
    %754 = vsyncpa [#allocation6], 1
    %755 = vsyncpa [#allocation4], 1
    %756 = vsyncpa [#allocation9], 1

</llo_original>
